<compile_context>
chip_gen: v6e
topology: v6e:2x2x1
jax: 0.10.0
libtpu: 0.0.40
codegen_flags: <defaults>
</compile_context>

<pallas_src>
import functools

import jax
import jax.numpy as jnp
from jax.experimental import pallas as pl
from jax.experimental.pallas import tpu as pltpu

_MiB = 1024 * 1024


# --------------------------------------------------------------------------- #
# Hardware / budget helpers
# --------------------------------------------------------------------------- #
def _device_kind():
    try:
        return jax.devices()[0].device_kind.lower()
    except Exception:
        return ""


def _is_v5e(kind=None):
    kind = _device_kind() if kind is None else kind
    return ("v5 lite" in kind) or ("v5e" in kind) or ("v5litepod" in kind)


def _is_v7x(kind=None):
    kind = _device_kind() if kind is None else kind
    return "v7" in kind


def _physical_vmem_bytes():
    kind = _device_kind()
    if _is_v7x(kind):
        return 64 * _MiB                      # v7x: 64 MiB per TensorCore
    if any(t in kind for t in ("v4", "v5", "v6")):
        return 128 * _MiB                     # v5e / v6e: 128 MiB
    return 64 * _MiB                          # unknown: be conservative


# --------------------------------------------------------------------------- #
# Tile selection
# --------------------------------------------------------------------------- #
def _tile_candidates(dim, target, granules):
    """Tiles dividing `dim`, multiples of the coarsest granule that yields any
    candidate, <= target.  Sorted descending.  Falls back to the full dim
    (a full-extent block is always a legal BlockSpec)."""
    for g in granules:
        cands = []
        t = g
        limit = min(target, dim)
        while t <= limit:
            if dim % t == 0:
                cands.append(t)
            t += g
        if cands:
            return sorted(cands, reverse=True)
    return [dim]


def _vmem_footprint(row_tile, h_tile, E, b_x, b_w):
    """Approximate VMEM bytes for one grid step with default double buffering."""
    return (2 * E * h_tile * b_w              # W1 column tile
            + 2 * h_tile * E * b_w            # W2 row tile
            + 2 * h_tile * b_w + 2 * E * b_w  # b1 / b2 tiles
            + 2 * row_tile * E * b_x          # x row tile
            + 2 * row_tile * E * b_x          # out row tile
            + row_tile * E * 4                # f32 accumulator
            + row_tile * h_tile * 4)          # f32 hidden intermediate


def _select_tiles(M, E, H, b_x, b_w, budget, sublane):
    row_cands = _tile_candidates(M, 1024, (256, 128, sublane))
    h_stream_cands = _tile_candidates(H, 2048, (256, 128))

    # 1) Keep the full weights VMEM-resident (grid-invariant weight index maps ->
    #    W1/W2 are fetched from HBM exactly once) whenever the budget allows.
    for rt in row_cands:
        if _vmem_footprint(rt, H, E, b_x, b_w) <= budget:
            return rt, H

    # 2) Stream weight tiles.  Weight HBM traffic scales with M // row_tile, so
    #    maximize the row tile first; keep h_tile >= 512 when possible so the
    #    per-k accumulator RMW / GELU epilogue and W1 column DMAs stay amortized.
    for h_floor in (512, 0):
        for rt in row_cands:
            for ht in h_stream_cands:
                if ht < h_floor:
                    continue
                if _vmem_footprint(rt, ht, E, b_x, b_w) <= budget:
                    return rt, ht

    # Nothing fits the budget: smallest tiles, let the compiler cope.
    return row_cands[-1], h_stream_cands[-1]


# --------------------------------------------------------------------------- #
# Kernel
# --------------------------------------------------------------------------- #
def _gelu(x, approximate):
    if approximate:
        # tanh approximation lowers to the EUP (its own VLIW slot) -> overlaps MXU.
        return jax.nn.gelu(x, approximate=True)
    # Exact erf-based GELU (torch.nn.GELU() default).
    return 0.5 * x * (1.0 + jax.lax.erf(x * 0.7071067811865476))


def _ffn_kernel(x_ref, w1_ref, b1_ref, w2_ref, b2_ref, o_ref, *scratch,
                zero_mean_out, approximate_gelu, gelu_low_precision,
                single_k, acc_in_out):
    """Grid = (row tiles [parallel], hidden-dim tiles [arbitrary / reduction])."""
    k = pl.program_id(1)

    # inTransform chunk: (TM, E) @ (E, TH), native-dtype operands into the MXU,
    # f32 accumulation via preferred_element_type.
    h = jnp.dot(x_ref[...], w1_ref[...], preferred_element_type=jnp.float32)
    h = h + b1_ref[...].astype(jnp.float32)

    # dropout (identity, p=0 / eval) -> activation -> dropout (identity)
    # TODO(synk): training-mode dropout (pltpu.prng_random_bits mask) not implemented.
    if gelu_low_precision:
        # bf16 GELU on v6e/v7x (bf16 VPU/EUP); h is cast to the weight dtype anyway.
        h = _gelu(h.astype(w2_ref.dtype), approximate_gelu)
    else:
        h = _gelu(h, approximate_gelu).astype(w2_ref.dtype)

    # outTransform partial product for this hidden tile, f32 accumulate.
    partial = jnp.dot(h, w2_ref[...], preferred_element_type=jnp.float32)

    def _finalize(y):
        if zero_mean_out:
            # LinearZeroMeanOutput: re-center over the full embedding axis
            # (E is never tiled, so the mean spans the complete output row).
            y = y - jnp.mean(y, axis=-1, keepdims=True)
        o_ref[...] = y.astype(o_ref.dtype)

    if single_k:
        # Whole hidden dim in one step: no accumulator needed.
        _finalize(partial + b2_ref[...].astype(jnp.float32))
        return

    # Multi-step reduction over the hidden dim.  Accumulate directly into the
    # (k-invariant) f32 output block when possible, else into an f32 VMEM scratch.
    acc_ref = o_ref if acc_in_out else scratch[0]

    @pl.when(k == 0)
    def _():
        # Fold the output bias into the accumulator init (saves an epilogue add).
        acc_ref[...] = (jnp.zeros(acc_ref.shape, acc_ref.dtype)
                        + b2_ref[...].astype(acc_ref.dtype))

    acc_ref[...] += partial.astype(acc_ref.dtype)

    @pl.when(k == pl.num_programs(1) - 1)
    def _():
        _finalize(acc_ref[...].astype(jnp.float32))


# --------------------------------------------------------------------------- #
# Wrapper
# --------------------------------------------------------------------------- #
def feed_forward(x, w1, b1, w2, b2, *, zero_mean_out=False, dropout_p=0.0,
                 approximate_gelu=True, row_tile=None, h_tile=None):
    """x: (B, T, E).  w1: (E, H), b1: (H,), w2: (H, E), b2: (E,), H = 4 * E.
    Weights are stored pre-transposed (in, out) so the kernel computes x @ W + b."""
    # TODO(synk): training-mode dropout not implemented (identity / eval only).
    assert dropout_p == 0.0, "only eval-mode / p=0 dropout is implemented"

    B, T, E = x.shape
    H = w1.shape[1]
    M = B * T
    x2d = x.reshape(M, E)

    b_x = jnp.dtype(x.dtype).itemsize
    b_w = jnp.dtype(w1.dtype).itemsize
    sublane = 16 if b_x < 4 else 8            # bf16 sublane packing granule

    physical = _physical_vmem_bytes()
    budget = (physical * 3) // 4              # ~96 MiB on v5e/v6e, ~48 MiB on v7x

    auto_rt, auto_ht = _select_tiles(M, E, H, b_x, b_w, budget, sublane)
    if row_tile is None:
        row_tile = auto_rt
    if h_tile is None:
        h_tile = auto_ht

    # v7x megacore: give the "parallel" axis >= 2 balanced row tiles when possible.
    if (row_tile == M and _is_v7x() and M % 2 == 0
            and (M // 2) >= 256 and (M // 2) % sublane == 0):
        row_tile = M // 2

    assert M % row_tile == 0 and H % h_tile == 0

    n_rows = M // row_tile
    n_k = H // h_tile
    single_k = (n_k == 1)
    out_is_f32 = jnp.dtype(x.dtype) == jnp.dtype(jnp.float32)
    acc_in_out = (not single_k) and out_is_f32
    use_scratch = (not single_k) and (not acc_in_out)
    gelu_low_precision = approximate_gelu and (b_w < 4) and not _is_v5e()

    kernel = functools.partial(
        _ffn_kernel,
        zero_mean_out=zero_mean_out,
        approximate_gelu=approximate_gelu,
        gelu_low_precision=gelu_low_precision,
        single_k=single_k,
        acc_in_out=acc_in_out)

    # VMEM limit derived from the actual tile footprint, capped per generation.
    footprint = _vmem_footprint(row_tile, h_tile, E, b_x, b_w)
    vmem_limit = int(min(physical - 8 * _MiB,
                         max(footprint * 5 // 4 + 2 * _MiB, 16 * _MiB)))

    # Advisory cost so XLA schedules surrounding ops around a correctly-weighted call.
    weight_passes = 1 if h_tile == H else n_rows
    cost = pl.CostEstimate(
        flops=4 * M * E * H,                  # two M x E x H matmuls
        transcendentals=M * H,                # one GELU per hidden element
        bytes_accessed=int(2 * M * E * b_x
                           + (E * H + H * E + H + E) * b_w * weight_passes))

    out2d = pl.pallas_call(
        kernel,
        out_shape=jax.ShapeDtypeStruct((M, E), x.dtype),
        grid_spec=pltpu.PrefetchScalarGridSpec(
            num_scalar_prefetch=0,
            grid=(n_rows, n_k),
            in_specs=[
                pl.BlockSpec((row_tile, E), lambda i, k: (i, 0)),   # x row tile
                pl.BlockSpec((E, h_tile),   lambda i, k: (0, k)),   # W1 column tile
                pl.BlockSpec((1, h_tile),   lambda i, k: (0, k)),   # b1 tile
                pl.BlockSpec((h_tile, E),   lambda i, k: (k, 0)),   # W2 row tile
                pl.BlockSpec((1, E),        lambda i, k: (0, 0)),   # b2 (resident)
            ],
            out_specs=pl.BlockSpec((row_tile, E), lambda i, k: (i, 0)),
            scratch_shapes=([pltpu.VMEM((row_tile, E), jnp.float32)]
                            if use_scratch else []),
        ),
        compiler_params=pltpu.CompilerParams(
            dimension_semantics=("parallel", "arbitrary"),
            vmem_limit_bytes=vmem_limit,
        ),
        cost_estimate=cost,
    )(x2d, w1, b1.reshape(1, H), w2, b2.reshape(1, E))

    return out2d.reshape(B, T, E)


# --------------------------------------------------------------------------- #
# Reference + self-test
# --------------------------------------------------------------------------- #
def _reference(x, w1, b1, w2, b2, zero_mean_out, approximate_gelu=True):
    xf = x.astype(jnp.float32)
    h = jnp.einsum("bte,eh->bth", xf, w1.astype(jnp.float32)) + b1.astype(jnp.float32)
    h = _gelu(h, approximate_gelu)
    y = jnp.einsum("bth,he->bte", h, w2.astype(jnp.float32)) + b2.astype(jnp.float32)
    if zero_mean_out:
        y = y - jnp.mean(y, axis=-1, keepdims=True)
    return y.astype(x.dtype)


if __name__ == "__main__":
    config = {"LinearZeroMean": True, "activation": "gelu"}

    def run_case(key, B, T, E, dtype, atol, rtol, row_tile=None, h_tile=None):
        H = 4 * E
        kx, kw1, kb1, kw2, kb2 = jax.random.split(key, 5)
        x = jax.random.normal(kx, (B, T, E), dtype=jnp.float32).astype(dtype)
        # nn.Linear weight is (out, in); stored pre-transposed (in, out) for the kernel.
        w1 = (jax.random.normal(kw1, (E, H), dtype=jnp.float32)
              / jnp.sqrt(E)).astype(dtype)
        b1 = (jax.random.normal(kb1, (H,), dtype=jnp.float32) * 0.01).astype(dtype)
        w2 = (jax.random.normal(kw2, (H, E), dtype=jnp.float32)
              / jnp.sqrt(H)).astype(dtype)
        b2 = (jax.random.normal(kb2, (E,), dtype=jnp.float32) * 0.01).astype(dtype)

        out = feed_forward(x, w1, b1, w2, b2,
                           zero_mean_out=config["LinearZeroMean"],
                           row_tile=row_tile, h_tile=h_tile)
        out = jax.block_until_ready(out)
        ref = _reference(x, w1, b1, w2, b2, config["LinearZeroMean"])
        assert out.shape == (B, T, E)
        assert jnp.allclose(out.astype(jnp.float32), ref.astype(jnp.float32),
                            atol=atol, rtol=rtol), \
            f"mismatch vs reference (dtype={dtype}, B={B}, T={T}, E={E})"

    key = jax.random.PRNGKey(0)
    k1, k2, k3, k4 = jax.random.split(key, 4)

    # Module-sized case (batch=2, context=8, embed=32), f32, auto tiles
    # (full weights VMEM-resident, single hidden step).
    run_case(k1, B=2, T=8, E=32, dtype=jnp.float32, atol=1e-4, rtol=1e-4)

    # Multi-tile case: row tiling + hidden-dim accumulation directly into the
    # k-invariant f32 output block (grid (2, 2), no scratch).
    run_case(k2, B=2, T=64, E=128, dtype=jnp.float32, atol=1e-3, rtol=1e-3,
             row_tile=64, h_tile=256)

    # bf16 operands: multi-step hidden reduction through the f32 VMEM scratch.
    run_case(k3, B=2, T=64, E=128, dtype=jnp.bfloat16, atol=5e-2, rtol=5e-2,
             row_tile=64, h_tile=256)

    # bf16 auto-tiled path (resident weights; bf16 GELU on v6e/v7x, f32 on v5e).
    run_case(k4, B=2, T=64, E=128, dtype=jnp.bfloat16, atol=5e-2, rtol=5e-2)

    print("KERNEL_OK")
</pallas_src>

<mosaic_0001>
module attributes {stable_mosaic.version = 11 : i64} {
  func.func @_ffn_kernel(%arg0: i32, %arg1: i32, %arg2: memref<16x32xf32, #tpu.memory_space<vmem>>, %arg3: memref<32x128xf32, #tpu.memory_space<vmem>>, %arg4: memref<1x128xf32, #tpu.memory_space<vmem>>, %arg5: memref<128x32xf32, #tpu.memory_space<vmem>>, %arg6: memref<1x32xf32, #tpu.memory_space<vmem>>, %arg7: memref<16x32xf32, #tpu.memory_space<vmem>>) attributes {dimension_semantics = [#tpu.dimension_semantics<parallel>, #tpu.dimension_semantics<arbitrary>], iteration_bounds = array<i64: 1, 1>, scalar_prefetch = 0 : i64, scratch_operands = 0 : i64, tpu.core_type = #tpu.core_type<tc>, window_params = [{transform_indices = @transform_0, window_bounds = array<i64: 16, 32>}, {transform_indices = @transform_1, window_bounds = array<i64: 32, 128>}, {transform_indices = @transform_2, window_bounds = array<i64: 1, 128>}, {transform_indices = @transform_3, window_bounds = array<i64: 128, 32>}, {pipeline_mode = #tpu.pipeline_mode<synchronous>, transform_indices = @transform_4, window_bounds = array<i64: 1, 32>}, {transform_indices = @transform_5, window_bounds = array<i64: 16, 32>}]} {
    %c0 = arith.constant 0 : index
    %c0_0 = arith.constant 0 : index
    %0 = vector.load %arg2[%c0, %c0_0] : memref<16x32xf32, #tpu.memory_space<vmem>>, vector<16x32xf32>
    %c0_1 = arith.constant 0 : index
    %c0_2 = arith.constant 0 : index
    %1 = vector.load %arg3[%c0_1, %c0_2] : memref<32x128xf32, #tpu.memory_space<vmem>>, vector<32x128xf32>
    %cst = arith.constant dense<0.000000e+00> : vector<16x128xf32>
    %2 = tpu.matmul %0, %1, %cst {dimension_numbers = #tpu.dot_dimension_numbers<[1], [0], [0], [1], [0, 0, 1, 1], [], []>} : vector<16x32xf32>, vector<32x128xf32>, vector<16x128xf32> -> vector<16x128xf32>
    %c0_3 = arith.constant 0 : index
    %c0_4 = arith.constant 0 : index
    %3 = vector.load %arg4[%c0_3, %c0_4] : memref<1x128xf32, #tpu.memory_space<vmem>>, vector<1x128xf32>
    %4 = vector.broadcast %3 : vector<1x128xf32> to vector<16x128xf32>
    %5 = arith.addf %2, %4 : vector<16x128xf32>
    %6 = arith.mulf %5, %5 : vector<16x128xf32>
    %7 = arith.mulf %5, %6 : vector<16x128xf32>
    %cst_5 = arith.constant 4.471500e-02 : f32
    %8 = vector.broadcast %cst_5 : f32 to vector<16x128xf32>
    %9 = arith.mulf %8, %7 : vector<16x128xf32>
    %10 = arith.addf %5, %9 : vector<16x128xf32>
    %cst_6 = arith.constant 0.797884583 : f32
    %11 = vector.broadcast %cst_6 : f32 to vector<16x128xf32>
    %12 = arith.mulf %11, %10 : vector<16x128xf32>
    %13 = math.tanh %12 : vector<16x128xf32>
    %cst_7 = arith.constant 1.000000e+00 : f32
    %14 = vector.broadcast %cst_7 : f32 to vector<16x128xf32>
    %15 = arith.addf %14, %13 : vector<16x128xf32>
    %cst_8 = arith.constant 5.000000e-01 : f32
    %16 = vector.broadcast %cst_8 : f32 to vector<16x128xf32>
    %17 = arith.mulf %16, %15 : vector<16x128xf32>
    %18 = arith.mulf %5, %17 : vector<16x128xf32>
    %c0_9 = arith.constant 0 : index
    %c0_10 = arith.constant 0 : index
    %19 = vector.load %arg5[%c0_9, %c0_10] : memref<128x32xf32, #tpu.memory_space<vmem>>, vector<128x32xf32>
    %cst_11 = arith.constant dense<0.000000e+00> : vector<16x32xf32>
    %20 = tpu.matmul %18, %19, %cst_11 {dimension_numbers = #tpu.dot_dimension_numbers<[1], [0], [0], [1], [0, 0, 1, 1], [], []>} : vector<16x128xf32>, vector<128x32xf32>, vector<16x32xf32> -> vector<16x32xf32>
    %c0_12 = arith.constant 0 : index
    %c0_13 = arith.constant 0 : index
    %21 = vector.load %arg6[%c0_12, %c0_13] : memref<1x32xf32, #tpu.memory_space<vmem>>, vector<1x32xf32>
    %22 = vector.broadcast %21 : vector<1x32xf32> to vector<16x32xf32>
    %23 = arith.addf %20, %22 : vector<16x32xf32>
    %cst_14 = arith.constant dense<0.000000e+00> : vector<16xf32>
    %24 = vector.multi_reduction <add>, %23, %cst_14 [1] : vector<16x32xf32> to vector<16xf32>
    %25 = vector.shape_cast %24 : vector<16xf32> to vector<16x1xf32>
    %cst_15 = arith.constant 3.200000e+01 : f32
    %26 = vector.broadcast %cst_15 : f32 to vector<16x1xf32>
    %27 = arith.divf %25, %26 : vector<16x1xf32>
    %28 = vector.broadcast %27 : vector<16x1xf32> to vector<16x32xf32>
    %29 = arith.subf %23, %28 : vector<16x32xf32>
    %c0_16 = arith.constant 0 : index
    %c0_17 = arith.constant 0 : index
    %30 = vector.load %arg7[%c0_16, %c0_17] : memref<16x32xf32, #tpu.memory_space<vmem>>, vector<16x32xf32>
    tpu.vector_store %arg7[%c0_16, %c0_17], %29 {strides = array<i32>} : memref<16x32xf32, #tpu.memory_space<vmem>>, vector<16x32xf32>,
    return
  }
  func.func @transform_0(%arg0: i32, %arg1: i32) -> (i32, i32) {
    %c0_i32 = arith.constant 0 : i32
    %c0_i32_0 = arith.constant 0 : i32
    return %arg0, %c0_i32 : i32, i32
  }
  func.func @transform_1(%arg0: i32, %arg1: i32) -> (i32, i32) {
    %c0_i32 = arith.constant 0 : i32
    %c0_i32_0 = arith.constant 0 : i32
    return %c0_i32, %arg1 : i32, i32
  }
  func.func @transform_2(%arg0: i32, %arg1: i32) -> (i32, i32) {
    %c0_i32 = arith.constant 0 : i32
    %c0_i32_0 = arith.constant 0 : i32
    return %c0_i32, %arg1 : i32, i32
  }
  func.func @transform_3(%arg0: i32, %arg1: i32) -> (i32, i32) {
    %c0_i32 = arith.constant 0 : i32
    %c0_i32_0 = arith.constant 0 : i32
    return %arg1, %c0_i32 : i32, i32
  }
  func.func @transform_4(%arg0: i32, %arg1: i32) -> (i32, i32) {
    %c0_i32 = arith.constant 0 : i32
    %c0_i32_0 = arith.constant 0 : i32
    %c0_i32_1 = arith.constant 0 : i32
    return %c0_i32, %c0_i32_0 : i32, i32
  }
  func.func @transform_5(%arg0: i32, %arg1: i32) -> (i32, i32) {
    %c0_i32 = arith.constant 0 : i32
    %c0_i32_0 = arith.constant 0 : i32
    return %arg0, %c0_i32 : i32, i32
  }
}

</mosaic_0001>

<llo_original>
// kernel: tpu_custom_call.1
$region0: #{tpu_custom_call.1}
  #allocation0 [shape = 'u32[]', space=smem, size = 0x4, offset = 0x4, fixed_abs, tag = 'smem constant byte address 0x4 - core index']
  #allocation1 [shape = 'u32[144,128]{1,0:T(1,128)}', space=vmem, size = 0x12000, scoped, tag = 'internal scratch']
  %s0 = inlined_call_operand.vmem [shape: f32[16,32], index: 0, kind: input, shape index: {}]
  %s1 = inlined_call_operand.vmem [shape: f32[32,128], index: 1, kind: input, shape index: {}]
  %s2 = inlined_call_operand.vmem [shape: f32[1,128], index: 2, kind: input, shape index: {}]
  %s3 = inlined_call_operand.vmem [shape: f32[128,32], index: 3, kind: input, shape index: {}]
  %s4 = inlined_call_operand.vmem [shape: f32[1,32], index: 4, kind: input, shape index: {}]
  %s5 = inlined_call_operand.hbm [shape: f32[16,32], index: 5, kind: output, shape index: {}]
  %s6 = sld [smem:[#allocation0]]
  $region30: #{tpu_custom_call.1} parent=0
    _
  %s8 = ssub.s32 1, %s6
  %s9 = scalar_select 0, %s8, %s6
  $region1: #{tpu_custom_call.1} parent=0
    #allocation2 [shape = 'u8[8192]{0}', space=vmem, size = 0x2000, scoped, tag = 'output window, operand 0, single buffered']
    #allocation3 [shape = 's32[1]{0}', space=sflag, size = 0x4, scoped, tag = 'scoped memory for tpu_custom_call.1']
    %10 = vsyncpa [#allocation3], 0
    // Predicated region
    $region2: #{tpu_custom_call.1} parent=1 // pred_check
      _
    $region3: #{tpu_custom_call.1} parent=1 // pred_check_branch
      %12 = sbr.rel (0) target = $region5
    $region4: #{tpu_custom_call.1} parent=1 // pred_region
      _
    $region5: #{tpu_custom_call.1} parent=1 // pred_fallthru
      _
    // Predicated region
    $region6: #{tpu_custom_call.1} parent=1 // pred_check
      _
    $region7: #{tpu_custom_call.1} parent=1 // pred_check_branch
      %14 = sbr.rel (0) target = $region9
    $region8: #{tpu_custom_call.1} parent=1 // pred_region
      _
    $region9: #{tpu_custom_call.1} parent=1 // pred_fallthru
      _
    // Predicated region
    $region10: #{tpu_custom_call.1} parent=1 // pred_check
      _
    $region11: #{tpu_custom_call.1} parent=1 // pred_check_branch
      %16 = sbr.rel (0) target = $region13
    $region12: #{tpu_custom_call.1} parent=1 // pred_region
      _
    $region13: #{tpu_custom_call.1} parent=1 // pred_fallthru
      _
    // Predicated region
    $region14: #{tpu_custom_call.1} parent=1 // pred_check
      _
    $region15: #{tpu_custom_call.1} parent=1 // pred_check_branch
      %18 = sbr.rel (0) target = $region17
    $region16: #{tpu_custom_call.1} parent=1 // pred_region
      _
    $region17: #{tpu_custom_call.1} parent=1 // pred_fallthru
      _
    // Predicated region
    $region18: #{tpu_custom_call.1} parent=1 // pred_check
      _
    $region19: #{tpu_custom_call.1} parent=1 // pred_check_branch
      %20 = sbr.rel (0) target = $region21
    $region20: #{tpu_custom_call.1} parent=1 // pred_region
      _
    $region21: #{tpu_custom_call.1} parent=1 // pred_fallthru
      _
    %v21 = vld [vmem:[%s0] sm:$0xff]
    %v22 = vld [vmem:[%s0 + $0x8] sm:$0xff]
    %v23 = vld [vmem:[%s1] sm:$0xff]
    %v24 = vld [vmem:[%s1 + $0x8] sm:$0xff]
    %v25 = vld [vmem:[%s1 + $0x10] sm:$0xff]
    %v26 = vld [vmem:[%s1 + $0x18] sm:$0xff]
    %v27 = vld [vmem:[%s2] sm:$0x1]
    %v29 = vlaneseq
    %v30 = vshrl.u32 %v29, 7
    %v31 = vsub.s32 0, %v30
    %v32 = vrot.slane %v27, %v31
    %vm34 = vcmask 261120
    %v36 = vsel %vm34, %v21, 0
    %v39 = vsel %vm34, %v22, 0
    %41 = vmatprep.subr.mxu0 0.0
    %42 = vmatpush1.msra.mxu0 0.0
    %43 = vmatprep.subr.mxu0 0.0
    %44 = vmatpush1.msra.mxu0 0.0
    %45 = vmatprep.subr.mxu0 0.0
    %46 = vmatpush1.msra.mxu0 0.0
    %47 = vmatprep.subr.mxu0 0.0
    %48 = vmatpush1.msra.mxu0 0.0
    %49 = vmatprep.subr.mxu0 0.0
    %50 = vmatpush1.msra.mxu0 0.0
    %51 = vmatprep.subr.mxu0 0.0
    %52 = vmatpush1.msra.mxu0 0.0
    %53 = vmatprep.subr.mxu0 0.0
    %54 = vmatpush1.msra.mxu0 0.0
    %55 = vmatprep.subr.mxu0 0.0
    %56 = vmatpush1.msra.mxu0 0.0
    %57 = vmatprep.subr.mxu0 0.0
    %58 = vmatpush1.msra.mxu0 0.0
    %59 = vmatprep.subr.mxu0 0.0
    %60 = vmatpush1.msra.mxu0 0.0
    %61 = vmatprep.subr.mxu0 0.0
    %62 = vmatpush1.msra.mxu0 0.0
    %63 = vmatprep.subr.mxu0 0.0
    %64 = vmatpush1.msra.mxu0 0.0
    %65 = vmatprep.subr.mxu0 0.0
    %66 = vmatpush1.msra.mxu0 %v26
    %67 = vmatprep.subr.mxu0 0.0
    %68 = vmatpush1.msra.mxu0 %v25
    %69 = vmatprep.subr.mxu0 0.0
    %70 = vmatpush1.msra.mxu0 %v24
    %71 = vmatprep.subr.mxu0 0.0
    %72 = vmatpush1.msra.mxu0 %v23
    %73 = vmatprep.subr.mxu0 0.0
    %74 = vmatpush2.msra.mxu0 0.0
    %75 = vmatprep.subr.mxu0 0.0
    %76 = vmatpush2.msra.mxu0 0.0
    %77 = vmatprep.subr.mxu0 0.0
    %78 = vmatpush2.msra.mxu0 0.0
    %79 = vmatprep.subr.mxu0 0.0
    %80 = vmatpush2.msra.mxu0 0.0
    %81 = vmatprep.subr.mxu0 0.0
    %82 = vmatpush2.msra.mxu0 0.0
    %83 = vmatprep.subr.mxu0 0.0
    %84 = vmatpush2.msra.mxu0 0.0
    %85 = vmatprep.subr.mxu0 0.0
    %86 = vmatpush2.msra.mxu0 0.0
    %87 = vmatprep.subr.mxu0 0.0
    %88 = vmatpush2.msra.mxu0 0.0
    %89 = vmatprep.subr.mxu0 0.0
    %90 = vmatpush2.msra.mxu0 0.0
    %91 = vmatprep.subr.mxu0 0.0
    %92 = vmatpush2.msra.mxu0 0.0
    %93 = vmatprep.subr.mxu0 0.0
    %94 = vmatpush2.msra.mxu0 0.0
    %95 = vmatprep.subr.mxu0 0.0
    %96 = vmatpush2.msra.mxu0 0.0
    %97 = vmatprep.subr.mxu0 0.0
    %98 = vmatpush2.msra.mxu0 0.0
    %99 = vmatprep.subr.mxu0 0.0
    %100 = vmatpush2.msra.mxu0 0.0
    %101 = vmatprep.subr.mxu0 0.0
    %102 = vmatpush2.msra.mxu0 0.0
    %103 = vmatprep.subr.mxu0 0.0
    %104 = vmatpush2.msra.mxu0 0.0
    %105 = vmatprep.mubr.f32.mxu0 0.0
    %106 = vmatmul.mubr.f32.gmra.mxu0 %v36
    %v107 = vpop.f32.mrf.mxu0
    %v108 = vadd.f32 %v32, %v107
    %v109 = vpop.f32.mrf.mxu0
    %110 = vmatprep.mubr.f32.mxu0 0.0
    %111 = vmatmul.mubr.f32.gmra.mxu0 %v39
    %v112 = vpop.f32.mrf.mxu0
    %v113 = vadd.f32 %v32, %v112
    %v114 = vpop.f32.mrf.mxu0
    %115 = vdwg.mxu0
    %v116 = vmul.f32 %v108, %v108
    %v117 = vmul.f32 %v113, %v113
    %v118 = vmul.f32 %v108, %v116
    %v119 = vmul.f32 %v113, %v117
    %v120 = vmul.f32 %v118, 0.044715
    %v121 = vmul.f32 %v119, 0.044715
    %v122 = vadd.f32 %v108, %v120
    %v123 = vadd.f32 %v113, %v121
    %v124 = vmul.f32 %v122, 0.7978846
    %v125 = vmul.f32 %v123, 0.7978846
    %v126 = vtanh.pop %v124
    %v127 = vtanh.pop %v125
    %v128 = vadd.f32 %v126, 1.0
    %v129 = vadd.f32 %v127, 1.0
    %v130 = vmul.f32 %v128, 0.5
    %v131 = vmul.f32 %v129, 0.5
    %v132 = vmul.f32 %v108, %v130
    %v133 = vmul.f32 %v113, %v131
    %v134 = vld [vmem:[%s3] sm:$0xff]
    %v135 = vld [vmem:[%s3 + $0x8] sm:$0xff]
    %v136 = vld [vmem:[%s3 + $0x10] sm:$0xff]
    %v137 = vld [vmem:[%s3 + $0x18] sm:$0xff]
    %v138 = vld [vmem:[%s3 + $0x20] sm:$0xff]
    %v139 = vld [vmem:[%s3 + $0x28] sm:$0xff]
    %v140 = vld [vmem:[%s3 + $0x30] sm:$0xff]
    %v141 = vld [vmem:[%s3 + $0x38] sm:$0xff]
    %v142 = vld [vmem:[%s3 + $0x40] sm:$0xff]
    %v143 = vld [vmem:[%s3 + $0x48] sm:$0xff]
    %v144 = vld [vmem:[%s3 + $0x50] sm:$0xff]
    %v145 = vld [vmem:[%s3 + $0x58] sm:$0xff]
    %v146 = vld [vmem:[%s3 + $0x60] sm:$0xff]
    %v147 = vld [vmem:[%s3 + $0x68] sm:$0xff]
    %v148 = vld [vmem:[%s3 + $0x70] sm:$0xff]
    %v149 = vld [vmem:[%s3 + $0x78] sm:$0xff]
    %v150 = vld [vmem:[%s4] sm:$0x1]
    %v152 = vlaneseq
    %v153 = vshrl.u32 %v152, 7
    %v154 = vsub.s32 0, %v153
    %v155 = vrot.slane %v150, %v154
    %157 = vmatprep.subr.mxu0 0.0
    %158 = vmatpush1.msra.mxu0 %v149
    %159 = vmatprep.subr.mxu0 0.0
    %160 = vmatpush1.msra.mxu0 %v148
    %161 = vmatprep.subr.mxu0 0.0
    %162 = vmatpush1.msra.mxu0 %v147
    %163 = vmatprep.subr.mxu0 0.0
    %164 = vmatpush1.msra.mxu0 %v146
    %165 = vmatprep.subr.mxu0 0.0
    %166 = vmatpush1.msra.mxu0 %v145
    %167 = vmatprep.subr.mxu0 0.0
    %168 = vmatpush1.msra.mxu0 %v144
    %169 = vmatprep.subr.mxu0 0.0
    %170 = vmatpush1.msra.mxu0 %v143
    %171 = vmatprep.subr.mxu0 0.0
    %172 = vmatpush1.msra.mxu0 %v142
    %173 = vmatprep.subr.mxu0 0.0
    %174 = vmatpush1.msra.mxu0 %v141
    %175 = vmatprep.subr.mxu0 0.0
    %176 = vmatpush1.msra.mxu0 %v140
    %177 = vmatprep.subr.mxu0 0.0
    %178 = vmatpush1.msra.mxu0 %v139
    %179 = vmatprep.subr.mxu0 0.0
    %180 = vmatpush1.msra.mxu0 %v138
    %181 = vmatprep.subr.mxu0 0.0
    %182 = vmatpush1.msra.mxu0 %v137
    %183 = vmatprep.subr.mxu0 0.0
    %184 = vmatpush1.msra.mxu0 %v136
    %185 = vmatprep.subr.mxu0 0.0
    %186 = vmatpush1.msra.mxu0 %v135
    %187 = vmatprep.subr.mxu0 0.0
    %188 = vmatpush1.msra.mxu0 %v134
    %189 = vmatprep.subr.mxu0 0.0
    %190 = vmatpush2.msra.mxu0 0.0
    %191 = vmatprep.subr.mxu0 0.0
    %192 = vmatpush2.msra.mxu0 0.0
    %193 = vmatprep.subr.mxu0 0.0
    %194 = vmatpush2.msra.mxu0 0.0
    %195 = vmatprep.subr.mxu0 0.0
    %196 = vmatpush2.msra.mxu0 0.0
    %197 = vmatprep.subr.mxu0 0.0
    %198 = vmatpush2.msra.mxu0 0.0
    %199 = vmatprep.subr.mxu0 0.0
    %200 = vmatpush2.msra.mxu0 0.0
    %201 = vmatprep.subr.mxu0 0.0
    %202 = vmatpush2.msra.mxu0 0.0
    %203 = vmatprep.subr.mxu0 0.0
    %204 = vmatpush2.msra.mxu0 0.0
    %205 = vmatprep.subr.mxu0 0.0
    %206 = vmatpush2.msra.mxu0 0.0
    %207 = vmatprep.subr.mxu0 0.0
    %208 = vmatpush2.msra.mxu0 0.0
    %209 = vmatprep.subr.mxu0 0.0
    %210 = vmatpush2.msra.mxu0 0.0
    %211 = vmatprep.subr.mxu0 0.0
    %212 = vmatpush2.msra.mxu0 0.0
    %213 = vmatprep.subr.mxu0 0.0
    %214 = vmatpush2.msra.mxu0 0.0
    %215 = vmatprep.subr.mxu0 0.0
    %216 = vmatpush2.msra.mxu0 0.0
    %217 = vmatprep.subr.mxu0 0.0
    %218 = vmatpush2.msra.mxu0 0.0
    %219 = vmatprep.subr.mxu0 0.0
    %220 = vmatpush2.msra.mxu0 0.0
    %221 = vmatprep.mubr.f32.mxu0 0.0
    %222 = vmatmul.mubr.f32.gmra.mxu0 %v132
    %v223 = vpop.f32.mrf.mxu0
    %v224 = vadd.f32 %v155, %v223
    %v225 = vpop.f32.mrf.mxu0
    %226 = vmatprep.mubr.f32.mxu0 0.0
    %227 = vmatmul.mubr.f32.gmra.mxu0 %v133
    %v228 = vpop.f32.mrf.mxu0
    %v229 = vadd.f32 %v155, %v228
    %v230 = vpop.f32.mrf.mxu0
    %231 = vdwg.mxu0
    %v232 = vsel %vm34, %v224, 0.0
    %233 = vadd.xlane.f32.xlu0 %v232
    %v234 = vpop.xlane.xlu0 %233
    %v235 = vsel %vm34, %v229, 0.0
    %236 = vadd.xlane.f32.xlu0 %v235
    %v237 = vpop.xlane.xlu0 %236
    %v238 = vrcp.pop 32.0
    %v239 = vmul.f32 %v234, %v238
    %v240 = vmul.f32 %v237, %v238
    %v241 = vsub.f32 %v224, %v239
    %v242 = vsub.f32 %v229, %v240
    %243 = vst.msk [vmem:[#allocation2] sm:$0xff] %vm34, %v241
    %244 = vst.msk [vmem:[#allocation2 + $0x8] sm:$0xff] %vm34, %v242
    // Predicated region
    $region22: #{tpu_custom_call.1} parent=1 // pred_check
      _
    $region23: #{tpu_custom_call.1} parent=1 // pred_check_branch
      %246 = sbr.rel (0) target = $region25
    $region24: #{tpu_custom_call.1} parent=1 // pred_region
      %s248 = ssub.s32 256, 256
      %249 = vsyncadd [#allocation3], %s248
      %s250 = sshll.u32 [#allocation2], 4
      %s251 = int_to_ptr.vmem [resolvable:$true] %s250
      %256 = dma.vmem_to_hbm [thread:$0]  %s251, 256, %s5, [#allocation3], 128, 128, 8
    $region25: #{tpu_custom_call.1} parent=1 // pred_fallthru
      _
    // Predicated region
    $region26: #{tpu_custom_call.1} parent=1 // pred_check
      _
    $region27: #{tpu_custom_call.1} parent=1 // pred_check_branch
      %258 = sbr.rel (0) target = $region29
    $region28: #{tpu_custom_call.1} parent=1 // pred_region
      %259 = dma.done [#allocation3], 256
    $region29: #{tpu_custom_call.1} parent=1 // pred_fallthru
      _
    %260 = vsyncpa [#allocation3], 1

</llo_original>
